<compile_context>
chip_gen: v7x
topology: tpu7x:2x2x1
jax: 0.10.0
libtpu: 0.0.40
codegen_flags: <defaults>
</compile_context>

<pallas_src>
import jax
import jax.numpy as jnp
from jax.experimental import pallas as pl
from jax.experimental.pallas import tpu as pltpu


def _pos_emb_kernel(w_ref, o_ref):
    # w_ref: (1, fb) flattened table chunk (resident across inner batch steps)
    # o_ref: (bb, fb) lane-dense output chunk
    # Sublane broadcast of the single table row over the batch chunk; the
    # kernel is output-DMA bound so this is effectively free.
    o_ref[...] = jnp.broadcast_to(w_ref[...], o_ref.shape)


def _tpu_memory_params():
    """Generation-aware block / scoped-VMEM sizing.

    v5e/v6e: 128 MiB physical VMEM -> 16 MiB blocks, 64 MiB scoped limit
    (amortizes the ~0.35 us per-grid-step overhead to a few percent and issues
    large output DMAs). v7x-class (64 MiB physical) or unknown -> 8 MiB blocks,
    32 MiB limit.
    """
    vmem_phys = None
    try:
        info = pltpu.get_tpu_info()
        vmem_phys = getattr(info, "vmem_capacity_bytes", None)
    except Exception:
        vmem_phys = None
    if vmem_phys is not None and vmem_phys >= 100 * 1024 * 1024:
        return {"target_block_bytes": 16 * 1024 * 1024,
                "vmem_limit_bytes": 64 * 1024 * 1024}
    return {"target_block_bytes": 8 * 1024 * 1024,
            "vmem_limit_bytes": 32 * 1024 * 1024}


def _pick_lane_block(flat, itemsize, target_block_bytes):
    """Lane-dimension chunk size (multiple of 128 dividing `flat`).

    Only tiles the lane dim when a single flattened row is bigger than the
    block target AND flat is a multiple of 128 (so every store stays
    unmasked). Otherwise keep the full lane-dense row.
    """
    row_bytes = flat * itemsize
    if row_bytes <= target_block_bytes or flat % 128 != 0:
        return flat
    max_lanes = max(128, ((target_block_bytes // itemsize) // 128) * 128)
    for cand in range(min(flat, max_lanes), 127, -128):
        if flat % cand == 0:
            return cand
    return flat


def _pick_batch_block(batch, block_row_bytes, target_block_bytes,
                      vmem_budget_bytes, want_multi_step):
    """Batch chunk size bb.

    bb is either the full batch or a multiple of 8 that divides batch evenly
    (satisfies the (8,128) sublane rule with no ragged boundary blocks).
    Constraints, in priority order:
      1. hard VMEM budget: 2*bb*row + 2*row (double-buffered output block +
         resident weight tile) must fit in the budget;
      2. if requested, keep >= 2 grid steps (so the 'parallel' batch axis can
         be sharded across v7x's two TensorCores);
      3. biggest chunk not exceeding target_block_bytes.
    """
    cands = sorted({batch} | {c for c in range(8, batch, 8) if batch % c == 0})

    def fits_vmem(bb):
        return 2 * bb * block_row_bytes + 2 * block_row_bytes <= vmem_budget_bytes

    feasible = [c for c in cands if fits_vmem(c)]
    if not feasible:
        feasible = [min(cands)]  # best effort: smallest legal block

    if want_multi_step:
        multi = [c for c in feasible if batch // c >= 2]
        if multi:
            feasible = multi

    under_target = [c for c in feasible if c * block_row_bytes <= target_block_bytes]
    return max(under_target) if under_target else min(feasible)


def positional_embedding(x, weight, *, out_dtype=None,
                         target_block_bytes=None, vmem_limit_bytes=None):
    """x: (batch, seq) int tokens (only batch size is used).
    weight: (maxlen, d_model) positional embedding table.
    out_dtype: optional output dtype (e.g. jnp.bfloat16) to halve HBM writes
    when the consumer is bf16; defaults to weight.dtype (matches PyTorch).
    Returns (batch, maxlen, d_model) = weight tiled over the batch."""
    batch = x.shape[0]
    maxlen, d_model = weight.shape
    flat = maxlen * d_model

    if out_dtype is not None:
        weight = weight.astype(out_dtype)
    dtype = weight.dtype
    itemsize = jnp.dtype(dtype).itemsize

    defaults = _tpu_memory_params()
    if target_block_bytes is None:
        target_block_bytes = defaults["target_block_bytes"]
    if vmem_limit_bytes is None:
        vmem_limit_bytes = defaults["vmem_limit_bytes"]

    # Lane-dense layout: flatten the table to one wide row so the output's
    # last dim is (a chunk of) maxlen*d_model instead of a possibly-narrow
    # d_model.
    w_flat = weight.reshape(1, flat)

    fb = _pick_lane_block(flat, itemsize, target_block_bytes)
    fb_bytes = fb * itemsize

    # Leave headroom under the scoped limit for Mosaic internals.
    vmem_budget = (vmem_limit_bytes * 3) // 4
    want_multi_step = (batch >= 16
                       and batch * flat * itemsize > 4 * 1024 * 1024)
    bb = _pick_batch_block(batch, fb_bytes, target_block_bytes,
                           vmem_budget, want_multi_step)

    nf = flat // fb
    nb = batch // bb
    grid = (nf, nb)  # flat outer -> weight tile resident across batch steps

    out_flat = pl.pallas_call(
        _pos_emb_kernel,
        out_shape=jax.ShapeDtypeStruct((batch, flat), dtype),
        grid_spec=pl.GridSpec(
            grid=grid,
            in_specs=[
                # Block index depends only on the outer flat axis: the table
                # chunk is DMA'd from HBM once per flat chunk and re-used for
                # every inner batch step (no per-step re-DMA).
                pl.BlockSpec((1, fb), lambda f, b: (0, f)),
            ],
            out_specs=pl.BlockSpec((bb, fb), lambda f, b: (b, f)),
        ),
        compiler_params=pltpu.CompilerParams(
            dimension_semantics=("parallel", "parallel"),
            vmem_limit_bytes=vmem_limit_bytes,
        ),
    )(w_flat)

    # Reshape (pure layout plumbing) back to the module's output convention.
    return out_flat.reshape(batch, maxlen, d_model)


if __name__ == "__main__":
    # Small shapes consistent with the module: batch=2, seq=8, maxlen=8, d_model=32
    batch, seq, maxlen, d_model = 2, 8, 8, 32

    key = jax.random.PRNGKey(0)
    k_w, k_x = jax.random.split(key)

    # nn.Embedding default init: N(0, 1), float32
    weight = jax.random.normal(k_w, (maxlen, d_model), dtype=jnp.float32)
    # x is only used for its batch size (token ids, int32)
    x = jax.random.randint(k_x, (batch, seq), 0, maxlen, dtype=jnp.int32)

    out = positional_embedding(x, weight)
    out = jax.block_until_ready(out)

    # Reference: broadcast/tile weight over the batch dimension
    ref = jnp.broadcast_to(weight[None, :, :], (batch, maxlen, d_model))
    assert out.shape == (batch, maxlen, d_model)
    assert out.dtype == jnp.float32
    assert jnp.allclose(out, ref), "mismatch vs reference broadcast"

    print("KERNEL_OK")
</pallas_src>

<mosaic_0001>
module attributes {stable_mosaic.version = 11 : i64} {
  func.func @_pos_emb_kernel(%arg0: i32, %arg1: i32, %arg2: memref<1x256xf32, #tpu.memory_space<vmem>>, %arg3: memref<2x256xf32, #tpu.memory_space<vmem>>) attributes {dimension_semantics = [#tpu.dimension_semantics<parallel>, #tpu.dimension_semantics<parallel>], iteration_bounds = array<i64: 1, 1>, scalar_prefetch = 0 : i64, scratch_operands = 0 : i64, tpu.core_type = #tpu.core_type<tc>, window_params = [{transform_indices = @transform_0, window_bounds = array<i64: 1, 256>}, {transform_indices = @transform_1, window_bounds = array<i64: 2, 256>}]} {
    %c0 = arith.constant 0 : index
    %c0_0 = arith.constant 0 : index
    %0 = vector.load %arg2[%c0, %c0_0] : memref<1x256xf32, #tpu.memory_space<vmem>>, vector<1x256xf32>
    %1 = vector.shape_cast %0 : vector<1x256xf32> to vector<1x256xf32>
    %2 = vector.broadcast %1 : vector<1x256xf32> to vector<2x256xf32>
    %c0_1 = arith.constant 0 : index
    %c0_2 = arith.constant 0 : index
    %3 = vector.load %arg3[%c0_1, %c0_2] : memref<2x256xf32, #tpu.memory_space<vmem>>, vector<2x256xf32>
    tpu.vector_store %arg3[%c0_1, %c0_2], %2 {strides = array<i32>} : memref<2x256xf32, #tpu.memory_space<vmem>>, vector<2x256xf32>,
    return
  }
  func.func @transform_0(%arg0: i32, %arg1: i32) -> (i32, i32) {
    %c0_i32 = arith.constant 0 : i32
    %c0_i32_0 = arith.constant 0 : i32
    return %c0_i32, %arg0 : i32, i32
  }
  func.func @transform_1(%arg0: i32, %arg1: i32) -> (i32, i32) {
    %c0_i32 = arith.constant 0 : i32
    return %arg1, %arg0 : i32, i32
  }
}

</mosaic_0001>

<llo_original>
// kernel: tpu_custom_call.1
$region0: #{tpu_custom_call.1}
  #allocation0 [shape = 'u32[]', space=smem, size = 0x4, offset = 0x4, fixed_abs, tag = 'smem constant byte address 0x4 - core index']
  #allocation1 [shape = 'u32[144,128]{1,0:T(1,128)}', space=vmem, size = 0x12000, scoped, tag = 'internal scratch']
  %s0 = inlined_call_operand.hbm [shape: f32[1,256], index: 0, kind: input, shape index: {}]
  %s1 = inlined_call_operand.hbm [shape: f32[2,256], index: 1, kind: output, shape index: {}]
  %s2 = sld [smem:[#allocation0]]
  $region18: #{tpu_custom_call.1} parent=0
    _
  %s4 = ssub.s32 1, %s2
  %s5 = scalar_select 0, %s4, %s2
  $region1: #{tpu_custom_call.1} parent=0
    #allocation2 [shape = 'u8[1024]{0}', space=vmem, size = 0x400, scoped, tag = 'input window, operand 0, single buffered']
    #allocation3 [shape = 's32[1]{0}', space=sflag, size = 0x4, scoped, tag = 'scoped memory for tpu_custom_call.1']
    #allocation4 [shape = 's32[1]{0}', space=sflag, size = 0x4, scoped, tag = 'scoped memory for tpu_custom_call.1']
    #allocation5 [shape = 'u8[2048]{0}', space=vmem, size = 0x800, scoped, tag = 'output window, operand 0, single buffered']
    %6 = vsyncpa [#allocation3], 0
    %7 = vsyncpa [#allocation4], 0
    // Predicated region
    $region2: #{tpu_custom_call.1} parent=1 // pred_check
      _
    $region3: #{tpu_custom_call.1} parent=1 // pred_check_branch
      %9 = sbr.rel (0) target = $region5
    $region4: #{tpu_custom_call.1} parent=1 // pred_region
      %s11 = ssub.s32 32, 32
      %12 = vsyncadd [#allocation3], %s11
      %s14 = sshll.u32 [#allocation2], 4
      %s15 = int_to_ptr.vmem [resolvable:$true] %s14
      %17 = dma.hbm_to_vmem [thread:$0]  %s0, 32, %s15, [#allocation3]
    $region5: #{tpu_custom_call.1} parent=1 // pred_fallthru
      _
    // Predicated region
    $region6: #{tpu_custom_call.1} parent=1 // pred_check
      _
    $region7: #{tpu_custom_call.1} parent=1 // pred_check_branch
      %19 = sbr.rel (0) target = $region9
    $region8: #{tpu_custom_call.1} parent=1 // pred_region
      %20 = dma.done [#allocation3], 32
    $region9: #{tpu_custom_call.1} parent=1 // pred_fallthru
      _
    %v21 = vld [vmem:[#allocation2] sm:$0x3]
    %v23 = vlaneseq
    %v24 = vshrl.u32 %v23, 7
    %v25 = vsub.s32 0, %v24
    %v26 = vrot.slane %v21, %v25
    %v27 = vlaneseq
    %v28 = vshrl.u32 %v27, 7
    %v29 = vsub.s32 1, %v28
    %v30 = vrot.slane %v21, %v29
    %v31 = vcombine.low %v26, %v30
    %v33 = vunpack.c.l.s4 1983009808
    %v34 = vunpack.c.0.s8 %v33
    %v35 = vlaneseq
    %v36 = vshrl.u32 %v35, 7
    %v37 = vsub.s32 %v34, %v36
    %v38 = vrot.slane %v31, %v37
    %40 = vst [vmem:[#allocation5] sm:$0xf] %v38
    // Predicated region
    $region10: #{tpu_custom_call.1} parent=1 // pred_check
      _
    $region11: #{tpu_custom_call.1} parent=1 // pred_check_branch
      %42 = sbr.rel (0) target = $region13
    $region12: #{tpu_custom_call.1} parent=1 // pred_region
      %s44 = ssub.s32 64, 64
      %45 = vsyncadd [#allocation4], %s44
      %s47 = sshll.u32 [#allocation5], 4
      %s48 = int_to_ptr.vmem [resolvable:$true] %s47
      %50 = dma.vmem_to_hbm [thread:$0]  %s48, 64, %s1, [#allocation4]
    $region13: #{tpu_custom_call.1} parent=1 // pred_fallthru
      _
    // Predicated region
    $region14: #{tpu_custom_call.1} parent=1 // pred_check
      _
    $region15: #{tpu_custom_call.1} parent=1 // pred_check_branch
      %52 = sbr.rel (0) target = $region17
    $region16: #{tpu_custom_call.1} parent=1 // pred_region
      %53 = dma.done [#allocation4], 64
    $region17: #{tpu_custom_call.1} parent=1 // pred_fallthru
      _
    %54 = vsyncpa [#allocation3], 1
    %55 = vsyncpa [#allocation4], 1

</llo_original>
